<compile_context>
chip_gen: v5e
topology: v5e:2x2
jax: 0.10.0
libtpu: 0.0.40
codegen_flags: <defaults>
</compile_context>

<pallas_src>
import numpy as np
import jax
import jax.numpy as jnp
from jax.experimental import pallas as pl
from jax.experimental.pallas import tpu as pltpu

_SPLIT_BYTES = 4 * 1024 * 1024  # only chunk the copy when the tensor is big
_MAX_CHUNKS = 4                 # max in-flight HBM->HBM DMAs


def _make_dma_copy_kernel(chunk_bounds):
    """Kernel factory: chunked HBM->HBM copy with all chunks in flight."""
    nchunks = len(chunk_bounds) - 1

    def kernel(x_ref, o_ref, sems):
        if nchunks == 1:
            cp = pltpu.make_async_copy(x_ref, o_ref, sems.at[0])
            cp.start()
            cp.wait()
            return
        copies = []
        for c in range(nchunks):
            lo = chunk_bounds[c]
            size = chunk_bounds[c + 1] - chunk_bounds[c]
            cp = pltpu.make_async_copy(
                x_ref.at[pl.ds(lo, size)],
                o_ref.at[pl.ds(lo, size)],
                sems.at[c],
            )
            cp.start()
            copies.append(cp)
        for cp in copies:
            cp.wait()

    return kernel


def flatten_layer(x, copy=True):
    """Equivalent of torch FlattenLayer.forward: x.view(x.size(0), -1)."""
    n = x.shape[0]
    feat = int(np.prod(x.shape[1:])) if x.ndim > 1 else 1
    # Row-major reshape matches torch .view on a contiguous tensor.
    x2d = jnp.reshape(x, (n, feat))
    if not copy:
        return x2d  # metadata-only; the fastest possible flatten

    total_bytes = n * feat * jnp.dtype(x.dtype).itemsize
    nchunks = min(_MAX_CHUNKS, n) if total_bytes >= _SPLIT_BYTES else 1
    nchunks = max(nchunks, 1)

    # Static, roughly equal chunk boundaries along the batch axis.
    base, rem = divmod(n, nchunks)
    bounds = [0]
    for c in range(nchunks):
        bounds.append(bounds[-1] + base + (1 if c < rem else 0))

    kernel = _make_dma_copy_kernel(tuple(bounds))
    return pl.pallas_call(
        kernel,
        out_shape=jax.ShapeDtypeStruct((n, feat), x.dtype),
        in_specs=[pl.BlockSpec(memory_space=pl.ANY)],
        out_specs=pl.BlockSpec(memory_space=pl.ANY),
        scratch_shapes=[pltpu.SemaphoreType.DMA((nchunks,))],
    )(x2d)


if __name__ == "__main__":
    key = jax.random.PRNGKey(0)
    # Small NCHW input consistent with typical conv-feature flattening.
    x = jax.random.normal(key, (2, 4, 16, 16), dtype=jnp.float32)

    out = flatten_layer(x)            # exercises the Pallas DMA kernel
    out = jax.block_until_ready(out)

    ref = np.asarray(x).reshape(x.shape[0], -1)
    assert out.shape == (2, 4 * 16 * 16), out.shape
    np.testing.assert_allclose(np.asarray(out), ref, rtol=0, atol=0)

    # Also sanity-check the zero-copy path.
    out2 = jax.block_until_ready(flatten_layer(x, copy=False))
    np.testing.assert_allclose(np.asarray(out2), ref, rtol=0, atol=0)

    print("KERNEL_OK")
</pallas_src>

<mosaic_0001>
module attributes {stable_mosaic.version = 11 : i64} {
  func.func @kernel(%arg0: memref<2x1024xf32, #tpu.memory_space<any>>, %arg1: memref<2x1024xf32, #tpu.memory_space<any>>, %arg2: memref<1x!tpu.dma_semaphore, #tpu.memory_space<semaphore_mem>>) attributes {dimension_semantics = [], scalar_prefetch = 0 : i64, scratch_operands = 1 : i64, tpu.core_type = #tpu.core_type<tc>} {
    %c0_i32 = arith.constant 0 : i32
    %0 = tpu.memref_slice %arg2[%c0_i32] : memref<1x!tpu.dma_semaphore, #tpu.memory_space<semaphore_mem>> -> memref<1x!tpu.dma_semaphore, #tpu.memory_space<semaphore_mem>>
    %1 = tpu.memref_squeeze %0 : memref<1x!tpu.dma_semaphore, #tpu.memory_space<semaphore_mem>> -> memref<!tpu.dma_semaphore, #tpu.memory_space<semaphore_mem>>
    tpu.enqueue_dma source(%arg0 : memref<2x1024xf32, #tpu.memory_space<any>>) target(%arg1 : memref<2x1024xf32, #tpu.memory_space<any>>) target_semaphore(%1 : memref<!tpu.dma_semaphore, #tpu.memory_space<semaphore_mem>>)
    %c0_i32_0 = arith.constant 0 : i32
    %2 = tpu.memref_slice %arg2[%c0_i32_0] : memref<1x!tpu.dma_semaphore, #tpu.memory_space<semaphore_mem>> -> memref<1x!tpu.dma_semaphore, #tpu.memory_space<semaphore_mem>>
    %3 = tpu.memref_squeeze %2 : memref<1x!tpu.dma_semaphore, #tpu.memory_space<semaphore_mem>> -> memref<!tpu.dma_semaphore, #tpu.memory_space<semaphore_mem>>
    tpu.wait_dma2 semaphore(%3 : memref<!tpu.dma_semaphore, #tpu.memory_space<semaphore_mem>>) src(%arg0 : memref<2x1024xf32, #tpu.memory_space<any>>) dst(%arg1 : memref<2x1024xf32, #tpu.memory_space<any>>)
    return
  }
}

</mosaic_0001>

<llo_original>
// kernel: tpu_custom_call.1
$region0: #{tpu_custom_call.1}
  #allocation0 [shape = 'u32[]', space=smem, size = 0x4, offset = 0x4, fixed_abs, tag = 'smem constant byte address 0x4 - core index']
  #allocation1 [shape = 'u32[72,128]{1,0:T(1,128)}', space=vmem, size = 0x9000, scoped, tag = 'internal scratch']
  #allocation2 [shape = 's32[1]{0}', space=sflag, size = 0x4, scoped, tag = 'scratch operand']
  #allocation3 [shape = 's32[]', space=sflag, size = 0x4, offset = 0, fixed_abs, tag = 'sflag constant byte address 0x0 - dummy sync flag']
  #allocation4 [shape = 'u32[0]{0}', space=smem, size = 0, offset = 0, fixed_abs, tag = 'smem constant byte address 0x0 - null']
  %s0 = inlined_call_operand.hbm [shape: f32[2,1024], index: 0, kind: input, shape index: {}]
  %s1 = inlined_call_operand.hbm [shape: f32[2,1024], index: 1, kind: output, shape index: {}]
  %s2 = sld [smem:[#allocation0]]
  $region2: #{tpu_custom_call.1} parent=0
    _
  %s4 = ssub.s32 1, %s2
  %s5 = scalar_select 0, %s4, %s2
  %s7 = sshll.u32 1, 14
  %s8 = sxor.u32 4294967295, %s7
  %s10 = sshll.u32 %s0, 4
  %s11 = int_to_ptr.hbm [resolvable:$true] %s10
  %s12 = sshll.u32 %s1, 4
  %s13 = int_to_ptr.hbm [resolvable:$true] %s12
  %16 = dma.general %s11, 256, %s13, [#allocation2], [#allocation3], [#allocation4], 0, 0
  %s17 = smul.u32 2, 1
  %s18 = smul.u32 %s17, 8
  %s19 = sshll.u32 %s18, 4
  %20 = dma.done [#allocation2], %s19
  %21 = vsyncmov [#allocation2]
  %s22 = vpop.sfrf %21
  %p23 = scmp.eq.s32.totalorder %s22, 0
  %p24 = pneg %p23
  %26 = shalt.err (%p24)

</llo_original>
